<compile_context>
chip_gen: v7x
topology: tpu7x:2x2x1
jax: 0.10.0
libtpu: 0.0.40
codegen_flags: <defaults>
</compile_context>

<pallas_src>
import numpy as np

import jax
import jax.numpy as jnp
from jax.experimental import pallas as pl
from jax.experimental.pallas import tpu as pltpu


def _gconv_scatter_kernel(tile_ref, first_ref, x_iT_ref, edgeT_ref, dst_ref, out_ref):
    """One edge chunk: message^T = sum_i x_i^T[i] * edge^T[i], scatter-add to its dst tile."""
    c = pl.program_id(0)
    d, _, te = edgeT_ref.shape            # [D, D, TE]   (lanes = edges)
    tn = out_ref.shape[1]                 # [D, TN]      (lanes = nodes)

    # First chunk of this destination tile: zero the resident accumulator.
    @pl.when(first_ref[c] == 1)
    def _init():
        out_ref[...] = jnp.zeros_like(out_ref)

    # --- Per-edge vec-mat, unrolled over the tiny node_dim (lane-dense VPU). --
    x_iT = x_iT_ref[...]                                          # [D, TE]
    messageT = edgeT_ref[0] * x_iT[0:1, :]
    for i in range(1, d):
        messageT = messageT + edgeT_ref[i] * x_iT[i:i + 1, :]     # [D, TE]

    # --- Scatter-add into this chunk's destination-node tile (MXU). ----------
    # One-hot built in-register directly in [TE, TN] orientation (no in-kernel
    # transpose).  Padded edges carry dst = -1 -> all-zero one-hot row.
    n_base = tile_ref[c] * tn
    local = dst_ref[...] - n_base                                 # [TE, 1] int32
    dst_oh = (jax.lax.broadcasted_iota(jnp.int32, (te, tn), 1)
              == local).astype(messageT.dtype)                    # [TE, TN]
    out_ref[...] += jnp.dot(messageT, dst_oh,
                            preferred_element_type=jnp.float32)   # [D, TN]


def gconv_forward(node, edge_index, edge, root, bias, *,
                  reduction="add", is_root=True, is_bias=True,
                  edge_tile=512, node_tile=128, compute_dtype=jnp.float32):
    if reduction not in ("add", "mean"):
        # TODO(synk): 'max' reduction (segment-max) is not expressible as a
        # one-hot matmul; raise instead of silently returning 'add' results.
        raise NotImplementedError(f"reduction={reduction!r} is not supported")

    N, D = node.shape
    E, edge_dim = edge.shape
    assert edge_dim == D * D, "edge_dim must equal node_dim ** 2"

    TE = int(edge_tile)
    TN = int(node_tile)
    assert TE % 128 == 0 and TN % 128 == 0, "tiles must be multiples of 128"
    N_pad = max(TN, ((N + TN - 1) // TN) * TN)
    num_tiles = N_pad // TN
    cdt = jnp.dtype(compute_dtype)
    isz = cdt.itemsize

    # ---- Host-side bucketing of edges by destination node tile --------------
    # (one-off graph preprocessing; requires concrete edge_index).
    ei = np.asarray(jax.device_get(edge_index))
    src_h = ei[0].astype(np.int64)
    dst_h = ei[1].astype(np.int64)
    if E > 0:
        assert src_h.min() >= 0 and src_h.max() < N, "edge_index[0] out of range"
        assert dst_h.min() >= 0 and dst_h.max() < N, "edge_index[1] out of range"

    tile_of_edge = dst_h // TN
    counts = np.bincount(tile_of_edge, minlength=num_tiles).astype(np.int64)
    chunks = np.maximum(1, -(-counts // TE))          # >=1 so every out tile is visited
    pad_counts = chunks * TE
    pad_starts = np.concatenate([[0], np.cumsum(pad_counts)])[:-1]
    E_total = int(pad_counts.sum())                   # per-tile padded, multiple of TE
    C = int(chunks.sum())                             # number of edge chunks = grid size

    perm = np.full((E_total,), -1, dtype=np.int64)    # padded-sorted slot -> original edge
    if E > 0:
        order = np.argsort(tile_of_edge, kind="stable")
        seg_starts = np.concatenate([[0], np.cumsum(counts)])[:-1]
        sorted_tiles = tile_of_edge[order]
        rank = np.arange(E, dtype=np.int64) - seg_starts[sorted_tiles]
        perm[pad_starts[sorted_tiles] + rank] = order
    valid = perm >= 0
    perm_clip = np.where(valid, perm, 0)

    chunk_tile = np.repeat(np.arange(num_tiles, dtype=np.int32), chunks)   # [C]
    chunk_first = np.zeros((C,), np.int32)
    chunk_first[np.concatenate([[0], np.cumsum(chunks)])[:-1]] = 1         # [C]

    # ---- Device-side operand prep (single fused gather per tensor). ---------
    if E > 0:
        gidx = jnp.asarray(perm_clip.astype(np.int32))
        sidx = jnp.asarray(src_h[perm_clip].astype(np.int32))
        # Hoisted source gather: x_i^T in bucketed order, lanes = edges.
        x_iT = jnp.take(node.astype(cdt), sidx, axis=0).T                  # [D, E_total]
        # TODO(synk): on v5e (mem-bound) stream edge in its native [E, D*D]
        # layout and transpose per-tile in-kernel on the XLU slot to avoid
        # this extra read+write pass over the largest tensor.
        edgeT = (jnp.take(edge.astype(cdt), gidx, axis=0)
                 .reshape(E_total, D, D).transpose(1, 2, 0))               # [D, D, E_total]
        dst_col = jnp.asarray(
            np.where(valid, dst_h[perm_clip], -1).astype(np.int32)).reshape(E_total, 1)
    else:
        x_iT = jnp.zeros((D, E_total), cdt)
        edgeT = jnp.zeros((D, D, E_total), cdt)
        dst_col = jnp.full((E_total, 1), -1, jnp.int32)

    # ---- Pallas call: 1-D grid over edge chunks, accumulate per dst tile. ---
    chunk_bytes = (D * TE + D * D * TE) * isz + TE * 4        # x tile + edge tile + dst tile
    scratch_bytes = TE * TN * isz + D * TE * isz + 2 * D * TN * 4
    vmem_limit = int(min(48 << 20, max(8 << 20, 4 * chunk_bytes + scratch_bytes + (2 << 20))))

    flops = 2 * D * D * E_total + 2 * D * TN * E_total
    bytes_accessed = ((D * E_total + D * D * E_total) * isz + E_total * 4
                      + D * N_pad * 4 + C * 8)

    grid_spec = pltpu.PrefetchScalarGridSpec(
        num_scalar_prefetch=2,                      # chunk_tile, chunk_first (SMEM)
        grid=(C,),
        in_specs=[
            pl.BlockSpec((D, TE), lambda c, tiles, first: (0, c)),         # x_i^T chunk
            pl.BlockSpec((D, D, TE), lambda c, tiles, first: (0, 0, c)),   # edge^T chunk
            pl.BlockSpec((TE, 1), lambda c, tiles, first: (c, 0)),         # dst ids column
        ],
        out_specs=pl.BlockSpec((D, TN), lambda c, tiles, first: (0, tiles[c])),
    )

    aggT = pl.pallas_call(
        _gconv_scatter_kernel,
        grid_spec=grid_spec,
        out_shape=jax.ShapeDtypeStruct((D, N_pad), jnp.float32),
        compiler_params=pltpu.CompilerParams(
            # Accumulation runs along the single chunk axis -> 'arbitrary'.
            # TODO(synk): v7x megacore — split chunks across the two TensorCores
            # (CORE_PARALLEL / pl.core_map) with per-core partial accumulators.
            dimension_semantics=("arbitrary",),
            vmem_limit_bytes=vmem_limit),
        cost_estimate=pl.CostEstimate(flops=int(flops), transcendentals=0,
                                      bytes_accessed=int(bytes_accessed)),
    )(jnp.asarray(chunk_tile), jnp.asarray(chunk_first), x_iT, edgeT, dst_col)

    # ---- Epilogue in plain XLA on the tiny [N, D] output. -------------------
    agg = aggT[:, :N].T.astype(jnp.float32)                                 # [N, D]
    if reduction == "mean":
        cnt = jax.ops.segment_sum(jnp.ones((E,), jnp.float32),
                                  jnp.asarray(dst_h.astype(np.int32)),
                                  num_segments=N)
        agg = agg / jnp.maximum(cnt, 1.0)[:, None]
    if is_bias and bias is not None:
        agg = agg + bias.astype(jnp.float32)
    if is_root and root is not None:
        agg = agg + node.astype(jnp.float32) @ root.astype(jnp.float32)
    return agg


def gconv_reference(node, edge_index, edge, root, bias, reduction="add"):
    """Pure-JAX reference mirroring the PyTorch module."""
    N, D = node.shape
    E = edge.shape[0]
    x_i = node[edge_index[0]]                                    # [E, D]
    e3 = edge.reshape(E, D, D)
    msg = jnp.sum(x_i[:, :, None] * e3, axis=1)                  # [E, D]
    agg = jax.ops.segment_sum(msg, edge_index[1], num_segments=N)
    if reduction == "mean":
        cnt = jax.ops.segment_sum(jnp.ones((E,)), edge_index[1], num_segments=N)
        agg = agg / jnp.maximum(cnt, 1.0)[:, None]
    if bias is not None:
        agg = agg + bias
    if root is not None:
        agg = agg + node @ root
    return agg


if __name__ == "__main__":
    # Small, module-consistent shapes: node_dim=8 -> edge_dim=64.
    # N=384 -> 3 destination-node tiles; E=2048 -> ~2 edge chunks per tile,
    # so bucketing, per-tile padding and accumulator init are all exercised.
    N, D, E = 384, 8, 2048
    key = jax.random.PRNGKey(0)
    k_node, k_e0, k_e1, k_edge, k_root, k_bias = jax.random.split(key, 6)

    node = jax.random.normal(k_node, (N, D), dtype=jnp.float32)
    edge_index = jnp.stack([
        jax.random.randint(k_e0, (E,), 0, N, dtype=jnp.int32),
        jax.random.randint(k_e1, (E,), 0, N, dtype=jnp.int32),
    ])                                                           # [2, E]
    edge = jax.random.normal(k_edge, (E, D * D), dtype=jnp.float32)

    # Parameters (shapes from __init__: root [D, D], bias [D]).
    root = jax.random.normal(k_root, (D, D), dtype=jnp.float32) * 0.1
    bias = jax.random.normal(k_bias, (D,), dtype=jnp.float32) * 0.1

    out = gconv_forward(node, edge_index, edge, root, bias,
                        reduction="add", is_root=True, is_bias=True)
    out = jax.block_until_ready(out)
    ref = gconv_reference(node, edge_index, edge, root, bias, reduction="add")
    assert out.shape == (N, D)
    assert jnp.allclose(out, ref, atol=1e-4, rtol=1e-4), "mismatch (add)"

    out_m = jax.block_until_ready(
        gconv_forward(node, edge_index, edge, root, bias, reduction="mean"))
    ref_m = gconv_reference(node, edge_index, edge, root, bias, reduction="mean")
    assert jnp.allclose(out_m, ref_m, atol=1e-4, rtol=1e-4), "mismatch (mean)"

    print("KERNEL_OK")
</pallas_src>

<mosaic_0001>
module attributes {stable_mosaic.version = 11 : i64} {
  func.func @_gconv_scatter_kernel(%arg0: i32, %arg1: memref<6xi32, #tpu.memory_space<smem>>, %arg2: memref<6xi32, #tpu.memory_space<smem>>, %arg3: memref<8x512xf32, #tpu.memory_space<vmem>>, %arg4: memref<8x8x512xf32, #tpu.memory_space<vmem>>, %arg5: memref<512x1xi32, #tpu.memory_space<vmem>>, %arg6: memref<8x128xf32, #tpu.memory_space<vmem>>) attributes {dimension_semantics = [#tpu.dimension_semantics<arbitrary>], iteration_bounds = array<i64: 6>, scalar_prefetch = 2 : i64, scratch_operands = 0 : i64, tpu.core_type = #tpu.core_type<tc>, window_params = [{transform_indices = @transform_0, window_bounds = array<i64: 8, 512>}, {transform_indices = @transform_1, window_bounds = array<i64: 8, 8, 512>}, {transform_indices = @transform_2, window_bounds = array<i64: 512, 1>}, {transform_indices = @transform_3, window_bounds = array<i64: 8, 128>}]} {
    %0 = arith.index_cast %arg0 : i32 to index
    %1 = memref.load %arg2[%0] : memref<6xi32, #tpu.memory_space<smem>>
    %c1_i32 = arith.constant 1 : i32
    %2 = arith.cmpi eq, %1, %c1_i32 : i32
    %3 = arith.extui %2 : i1 to i32
    %c0_i32 = arith.constant 0 : i32
    %4 = arith.cmpi ne, %3, %c0_i32 : i32
    scf.if %4 {
      %cst_24 = arith.constant 0.000000e+00 : f32
      %68 = vector.broadcast %cst_24 : f32 to vector<8x128xf32>
      %c0_25 = arith.constant 0 : index
      %c0_26 = arith.constant 0 : index
      %69 = vector.load %arg6[%c0_25, %c0_26] : memref<8x128xf32, #tpu.memory_space<vmem>>, vector<8x128xf32>
      tpu.vector_store %arg6[%c0_25, %c0_26], %68 {strides = array<i32>} : memref<8x128xf32, #tpu.memory_space<vmem>>, vector<8x128xf32>,
    } else {
    }
    %c0 = arith.constant 0 : index
    %c0_0 = arith.constant 0 : index
    %5 = vector.load %arg3[%c0, %c0_0] : memref<8x512xf32, #tpu.memory_space<vmem>>, vector<8x512xf32>
    %c0_1 = arith.constant 0 : index
    %c0_2 = arith.constant 0 : index
    %c0_3 = arith.constant 0 : index
    %6 = vector.load %arg4[%c0_1, %c0_2, %c0_3] : memref<8x8x512xf32, #tpu.memory_space<vmem>>, vector<1x8x512xf32>
    %7 = vector.shape_cast %6 : vector<1x8x512xf32> to vector<8x512xf32>
    %8 = vector.extract_strided_slice %5 {offsets = [0, 0], sizes = [1, 512], strides = [1, 1]} : vector<8x512xf32> to vector<1x512xf32>
    %9 = vector.broadcast %8 : vector<1x512xf32> to vector<8x512xf32>
    %10 = arith.mulf %7, %9 : vector<8x512xf32>
    %c1 = arith.constant 1 : index
    %c0_4 = arith.constant 0 : index
    %c0_5 = arith.constant 0 : index
    %11 = vector.load %arg4[%c1, %c0_4, %c0_5] : memref<8x8x512xf32, #tpu.memory_space<vmem>>, vector<1x8x512xf32>
    %12 = vector.shape_cast %11 : vector<1x8x512xf32> to vector<8x512xf32>
    %13 = vector.extract_strided_slice %5 {offsets = [1, 0], sizes = [1, 512], strides = [1, 1]} : vector<8x512xf32> to vector<1x512xf32>
    %14 = vector.broadcast %13 : vector<1x512xf32> to vector<8x512xf32>
    %15 = arith.mulf %12, %14 : vector<8x512xf32>
    %16 = arith.addf %10, %15 : vector<8x512xf32>
    %c2 = arith.constant 2 : index
    %c0_6 = arith.constant 0 : index
    %c0_7 = arith.constant 0 : index
    %17 = vector.load %arg4[%c2, %c0_6, %c0_7] : memref<8x8x512xf32, #tpu.memory_space<vmem>>, vector<1x8x512xf32>
    %18 = vector.shape_cast %17 : vector<1x8x512xf32> to vector<8x512xf32>
    %19 = vector.extract_strided_slice %5 {offsets = [2, 0], sizes = [1, 512], strides = [1, 1]} : vector<8x512xf32> to vector<1x512xf32>
    %20 = vector.broadcast %19 : vector<1x512xf32> to vector<8x512xf32>
    %21 = arith.mulf %18, %20 : vector<8x512xf32>
    %22 = arith.addf %16, %21 : vector<8x512xf32>
    %c3 = arith.constant 3 : index
    %c0_8 = arith.constant 0 : index
    %c0_9 = arith.constant 0 : index
    %23 = vector.load %arg4[%c3, %c0_8, %c0_9] : memref<8x8x512xf32, #tpu.memory_space<vmem>>, vector<1x8x512xf32>
    %24 = vector.shape_cast %23 : vector<1x8x512xf32> to vector<8x512xf32>
    %25 = vector.extract_strided_slice %5 {offsets = [3, 0], sizes = [1, 512], strides = [1, 1]} : vector<8x512xf32> to vector<1x512xf32>
    %26 = vector.broadcast %25 : vector<1x512xf32> to vector<8x512xf32>
    %27 = arith.mulf %24, %26 : vector<8x512xf32>
    %28 = arith.addf %22, %27 : vector<8x512xf32>
    %c4 = arith.constant 4 : index
    %c0_10 = arith.constant 0 : index
    %c0_11 = arith.constant 0 : index
    %29 = vector.load %arg4[%c4, %c0_10, %c0_11] : memref<8x8x512xf32, #tpu.memory_space<vmem>>, vector<1x8x512xf32>
    %30 = vector.shape_cast %29 : vector<1x8x512xf32> to vector<8x512xf32>
    %31 = vector.extract_strided_slice %5 {offsets = [4, 0], sizes = [1, 512], strides = [1, 1]} : vector<8x512xf32> to vector<1x512xf32>
    %32 = vector.broadcast %31 : vector<1x512xf32> to vector<8x512xf32>
    %33 = arith.mulf %30, %32 : vector<8x512xf32>
    %34 = arith.addf %28, %33 : vector<8x512xf32>
    %c5 = arith.constant 5 : index
    %c0_12 = arith.constant 0 : index
    %c0_13 = arith.constant 0 : index
    %35 = vector.load %arg4[%c5, %c0_12, %c0_13] : memref<8x8x512xf32, #tpu.memory_space<vmem>>, vector<1x8x512xf32>
    %36 = vector.shape_cast %35 : vector<1x8x512xf32> to vector<8x512xf32>
    %37 = vector.extract_strided_slice %5 {offsets = [5, 0], sizes = [1, 512], strides = [1, 1]} : vector<8x512xf32> to vector<1x512xf32>
    %38 = vector.broadcast %37 : vector<1x512xf32> to vector<8x512xf32>
    %39 = arith.mulf %36, %38 : vector<8x512xf32>
    %40 = arith.addf %34, %39 : vector<8x512xf32>
    %c6 = arith.constant 6 : index
    %c0_14 = arith.constant 0 : index
    %c0_15 = arith.constant 0 : index
    %41 = vector.load %arg4[%c6, %c0_14, %c0_15] : memref<8x8x512xf32, #tpu.memory_space<vmem>>, vector<1x8x512xf32>
    %42 = vector.shape_cast %41 : vector<1x8x512xf32> to vector<8x512xf32>
    %43 = vector.extract_strided_slice %5 {offsets = [6, 0], sizes = [1, 512], strides = [1, 1]} : vector<8x512xf32> to vector<1x512xf32>
    %44 = vector.broadcast %43 : vector<1x512xf32> to vector<8x512xf32>
    %45 = arith.mulf %42, %44 : vector<8x512xf32>
    %46 = arith.addf %40, %45 : vector<8x512xf32>
    %c7 = arith.constant 7 : index
    %c0_16 = arith.constant 0 : index
    %c0_17 = arith.constant 0 : index
    %47 = vector.load %arg4[%c7, %c0_16, %c0_17] : memref<8x8x512xf32, #tpu.memory_space<vmem>>, vector<1x8x512xf32>
    %48 = vector.shape_cast %47 : vector<1x8x512xf32> to vector<8x512xf32>
    %49 = vector.extract_strided_slice %5 {offsets = [7, 0], sizes = [1, 512], strides = [1, 1]} : vector<8x512xf32> to vector<1x512xf32>
    %50 = vector.broadcast %49 : vector<1x512xf32> to vector<8x512xf32>
    %51 = arith.mulf %48, %50 : vector<8x512xf32>
    %52 = arith.addf %46, %51 : vector<8x512xf32>
    %53 = arith.index_cast %arg0 : i32 to index
    %54 = memref.load %arg1[%53] : memref<6xi32, #tpu.memory_space<smem>>
    %c128_i32 = arith.constant 128 : i32
    %55 = arith.muli %54, %c128_i32 : i32
    %c0_18 = arith.constant 0 : index
    %c0_19 = arith.constant 0 : index
    %56 = vector.load %arg5[%c0_18, %c0_19] : memref<512x1xi32, #tpu.memory_space<vmem>>, vector<512x1xi32>
    %57 = vector.broadcast %55 : i32 to vector<512x1xi32>
    %58 = arith.subi %56, %57 : vector<512x1xi32>
    %59 = tpu.iota {dimensions = array<i32: 1>} : vector<512x128xi32>
    %60 = vector.broadcast %58 : vector<512x1xi32> to vector<512x128xi32>
    %61 = arith.cmpi eq, %59, %60 : vector<512x128xi32>
    %62 = arith.extui %61 : vector<512x128xi1> to vector<512x128xi32>
    %63 = arith.sitofp %62 : vector<512x128xi32> to vector<512x128xf32>
    %c0_20 = arith.constant 0 : index
    %c0_21 = arith.constant 0 : index
    %64 = vector.load %arg6[%c0_20, %c0_21] : memref<8x128xf32, #tpu.memory_space<vmem>>, vector<8x128xf32>
    %cst = arith.constant dense<0.000000e+00> : vector<8x128xf32>
    %65 = tpu.matmul %52, %63, %cst {dimension_numbers = #tpu.dot_dimension_numbers<[1], [0], [0], [1], [0, 0, 1, 1], [], []>} : vector<8x512xf32>, vector<512x128xf32>, vector<8x128xf32> -> vector<8x128xf32>
    %66 = arith.addf %64, %65 : vector<8x128xf32>
    %c0_22 = arith.constant 0 : index
    %c0_23 = arith.constant 0 : index
    %67 = vector.load %arg6[%c0_22, %c0_23] : memref<8x128xf32, #tpu.memory_space<vmem>>, vector<8x128xf32>
    tpu.vector_store %arg6[%c0_22, %c0_23], %66 {strides = array<i32>} : memref<8x128xf32, #tpu.memory_space<vmem>>, vector<8x128xf32>,
    return
  }
  func.func @transform_0(%arg0: i32, %arg1: memref<6xi32, #tpu.memory_space<smem>>, %arg2: memref<6xi32, #tpu.memory_space<smem>>) -> (i32, i32) {
    %c0_i32 = arith.constant 0 : i32
    %c0_i32_0 = arith.constant 0 : i32
    return %c0_i32, %arg0 : i32, i32
  }
  func.func @transform_1(%arg0: i32, %arg1: memref<6xi32, #tpu.memory_space<smem>>, %arg2: memref<6xi32, #tpu.memory_space<smem>>) -> (i32, i32, i32) {
    %c0_i32 = arith.constant 0 : i32
    %c0_i32_0 = arith.constant 0 : i32
    %c0_i32_1 = arith.constant 0 : i32
    return %c0_i32, %c0_i32_0, %arg0 : i32, i32, i32
  }
  func.func @transform_2(%arg0: i32, %arg1: memref<6xi32, #tpu.memory_space<smem>>, %arg2: memref<6xi32, #tpu.memory_space<smem>>) -> (i32, i32) {
    %c0_i32 = arith.constant 0 : i32
    %c0_i32_0 = arith.constant 0 : i32
    return %arg0, %c0_i32 : i32, i32
  }
  func.func @transform_3(%arg0: i32, %arg1: memref<6xi32, #tpu.memory_space<smem>>, %arg2: memref<6xi32, #tpu.memory_space<smem>>) -> (i32, i32) {
    %0 = arith.index_cast %arg0 : i32 to index
    %1 = memref.load %arg1[%0] : memref<6xi32, #tpu.memory_space<smem>>
    %c0_i32 = arith.constant 0 : i32
    %c0_i32_0 = arith.constant 0 : i32
    return %c0_i32, %1 : i32, i32
  }
}

</mosaic_0001>

<llo_original>
// kernel: tpu_custom_call.1
$region0: #{tpu_custom_call.1}
  #allocation0 [shape = 'u32[]', space=smem, size = 0x4, offset = 0x4, fixed_abs, tag = 'smem constant byte address 0x4 - core index']
  #allocation1 [shape = 'u32[144,128]{1,0:T(1,128)}', space=vmem, size = 0x12000, scoped, tag = 'internal scratch']
  #allocation2 [shape = 's32[1]{0}', space=sflag, size = 0x4, scoped, tag = 'scoped memory for tpu_custom_call.1']
  #allocation3 [shape = 'u8[512]{0}', space=smem, size = 0x200, scoped, tag = 'prefetched SMEM operand 0']
  #allocation4 [shape = 'u8[512]{0}', space=smem, size = 0x200, scoped, tag = 'prefetched SMEM operand 1']
  %s0 = inlined_call_operand.vmem [shape: s32[6], index: 0, kind: input, shape index: {}]
  %s1 = inlined_call_operand.vmem [shape: s32[6], index: 1, kind: input, shape index: {}]
  %s2 = inlined_call_operand.vmem [shape: f32[8,3072], index: 2, kind: input, shape index: {}]
  %s3 = inlined_call_operand.vmem [shape: f32[8,8,3072], index: 3, kind: input, shape index: {}]
  %s4 = inlined_call_operand.vmem [shape: s32[3072,1], index: 4, kind: input, shape index: {}]
  %s5 = inlined_call_operand.hbm [shape: f32[8,384], index: 5, kind: output, shape index: {}]
  %s6 = sld [smem:[#allocation0]]
  $region72: #{tpu_custom_call.1} parent=0
    _
  %s8 = ssub.s32 1, %s6
  %s9 = scalar_select 0, %s8, %s6
  %s10 = sshll.u32 %s0, 4
  %s11 = int_to_ptr.vmem [resolvable:$true] %s10
  %13 = dma.vmem_to_smem %s11, 16, [#allocation3], [#allocation2]
  %s14 = sshll.u32 %s1, 4
  %s15 = int_to_ptr.vmem [resolvable:$true] %s14
  %17 = dma.vmem_to_smem %s15, 16, [#allocation4], [#allocation2]
  %18 = dma.done [#allocation2], 32
  %19 = sfence
  $region1: #{tpu_custom_call.1} parent=0
    #allocation5 [shape = 'u8[262144]{0}', space=vmem, size = 0x40000, scoped, tag = 'input window, operand 3']
    #allocation6 [shape = 'u8[8192]{0}', space=vmem, size = 0x2000, scoped, tag = 'output window, operand 0']
    #allocation7 [shape = 's32[2]{0}', space=sflag, size = 0x8, scoped, tag = 'scoped memory for tpu_custom_call.1']
    %20 = vsyncpa [#allocation7], 0
    %s21 = scalar_lea.sflag [#allocation7], 1
    %22 = vsyncpa %s21, 0
    loop: start=0, step=1, limit=8
    $region2: #{tpu_custom_call.1} parent=1 // loop_pre_header
      _
    $region3: #{tpu_custom_call.1} parent=1 // loop_header
      %s24 = sphi 0, %s28
      %p25 = scmp.ge.s32.totalorder %s24, 8
      %s34 = sphi 0, %s36
      %s37 = sphi 0, %s34
      %s38 = sphi 0, %s37
      %s54 = sphi 0, %s38
      %s60 = sphi 0, %s62
      %s63 = sphi 0, %s60
      %s64 = sphi 0, %s63
      %s80 = sphi 0, %s64
      %s86 = sphi 0, %s88
      %s89 = sphi 0, %s86
      %s90 = sphi 0, %s89
      %s106 = sphi 0, %s90
      %s114 = sphi 0, %s116
      %s117 = sphi 0, %s114
      %s118 = sphi 0, %s117
      %s134 = sphi 0, %s118
    $region4: #{tpu_custom_call.1} parent=1 // loop_header_branch
      %27 = sbr.rel (%p25) target = $region8
    $region5: #{tpu_custom_call.1} parent=1 // loop_body
      %s29 = ssub.s32 %s24, 1
      %s30 = ssub.s32 %s24, 2
      %s31 = sadd.s32 %s24, 1
      %s32 = ssub.s32 %s24, %s31
      %p33 = scmp.eq.s32.totalorder %s32, 0
      %s35 = sadd.s32 %s34, 1
      %s36 = scalar_select %p33, %s34, %s35
      %p39 = pneg %p33
      %p40 = scmp.eq.s32.totalorder %s24, 5
      %p41 = por %p39, %p40
      %p42 = scmp.ne.s32.totalorder %s34, %s37
      %p43 = scmp.eq.s32.totalorder %s24, 0
      %p44 = por %p42, %p43
      %p45 = scmp.ne.s32.totalorder %s34, %s37
      %p46 = scmp.eq.s32.totalorder %s29, 5
      %p47 = por %p45, %p46
      %p48 = scmp.ne.s32.totalorder %s37, %s38
      %p49 = scmp.eq.s32.totalorder %s29, 0
      %p50 = por %p48, %p49
      %p51 = scmp.ne.s32.totalorder %s37, %s38
      %p52 = scmp.eq.s32.totalorder %s30, 5
      %p53 = por %p51, %p52
      %p55 = scmp.ne.s32.totalorder %s38, %s54
      %p56 = scmp.eq.s32.totalorder %s30, 0
      %p57 = por %p55, %p56
      %s58 = ssub.s32 %s24, %s31
      %p59 = scmp.eq.s32.totalorder %s58, 0
      %s61 = sadd.s32 %s60, 1
      %s62 = scalar_select %p59, %s60, %s61
      %p65 = pneg %p59
      %p66 = scmp.eq.s32.totalorder %s24, 5
      %p67 = por %p65, %p66
      %p68 = scmp.ne.s32.totalorder %s60, %s63
      %p69 = scmp.eq.s32.totalorder %s24, 0
      %p70 = por %p68, %p69
      %p71 = scmp.ne.s32.totalorder %s60, %s63
      %p72 = scmp.eq.s32.totalorder %s29, 5
      %p73 = por %p71, %p72
      %p74 = scmp.ne.s32.totalorder %s63, %s64
      %p75 = scmp.eq.s32.totalorder %s29, 0
      %p76 = por %p74, %p75
      %p77 = scmp.ne.s32.totalorder %s63, %s64
      %p78 = scmp.eq.s32.totalorder %s30, 5
      %p79 = por %p77, %p78
      %p81 = scmp.ne.s32.totalorder %s64, %s80
      %p82 = scmp.eq.s32.totalorder %s30, 0
      %p83 = por %p81, %p82
      %s84 = ssub.s32 %s24, %s31
      %p85 = scmp.eq.s32.totalorder %s84, 0
      %s87 = sadd.s32 %s86, 1
      %s88 = scalar_select %p85, %s86, %s87
      %p91 = pneg %p85
      %p92 = scmp.eq.s32.totalorder %s24, 5
      %p93 = por %p91, %p92
      %p94 = scmp.ne.s32.totalorder %s86, %s89
      %p95 = scmp.eq.s32.totalorder %s24, 0
      %p96 = por %p94, %p95
      %p97 = scmp.ne.s32.totalorder %s86, %s89
      %p98 = scmp.eq.s32.totalorder %s29, 5
      %p99 = por %p97, %p98
      %p100 = scmp.ne.s32.totalorder %s89, %s90
      %p101 = scmp.eq.s32.totalorder %s29, 0
      %p102 = por %p100, %p101
      %p103 = scmp.ne.s32.totalorder %s89, %s90
      %p104 = scmp.eq.s32.totalorder %s30, 5
      %p105 = por %p103, %p104
      %p107 = scmp.ne.s32.totalorder %s90, %s106
      %p108 = scmp.eq.s32.totalorder %s30, 0
      %p109 = por %p107, %p108
      %s110 = sld [smem:[#allocation3 + %s24]]
      %s111 = sld [smem:[#allocation3 + %s31]]
      %s112 = ssub.s32 %s110, %s111
      %p113 = scmp.eq.s32.totalorder %s112, 0
      %s115 = sadd.s32 %s114, 1
      %s116 = scalar_select %p113, %s114, %s115
      %p119 = pneg %p113
      %p120 = scmp.eq.s32.totalorder %s24, 5
      %p121 = por %p119, %p120
      %p122 = scmp.ne.s32.totalorder %s114, %s117
      %p123 = scmp.eq.s32.totalorder %s24, 0
      %p124 = por %p122, %p123
      %p125 = scmp.ne.s32.totalorder %s114, %s117
      %p126 = scmp.eq.s32.totalorder %s29, 5
      %p127 = por %p125, %p126
      %p128 = scmp.ne.s32.totalorder %s117, %s118
      %p129 = scmp.eq.s32.totalorder %s29, 0
      %p130 = por %p128, %p129
      %p131 = scmp.ne.s32.totalorder %s117, %s118
      %p132 = scmp.eq.s32.totalorder %s30, 5
      %p133 = por %p131, %p132
      %p135 = scmp.ne.s32.totalorder %s118, %s134
      %p136 = scmp.eq.s32.totalorder %s30, 0
      %p137 = por %p135, %p136
      %p138 = scmp.le.s32.totalorder 1, %s24
      %p139 = scmp.lt.s32.totalorder %s24, 7
      %p140 = pnand %p138, %p139
      %p141 = pneg %p140
      // Predicated region
      $region9: #{tpu_custom_call.1} parent=5 // pred_check
        _
      $region10: #{tpu_custom_call.1} parent=5 // pred_check_branch
        %143 = sbr.rel (%p140) target = $region12
      $region11: #{tpu_custom_call.1} parent=5 // pred_region
        %s144 = ssub.s32 %s24, 1
      $region12: #{tpu_custom_call.1} parent=5 // pred_fallthru
        _
      %p145 = scmp.lt.s32.totalorder %s24, 6
      // Predicated region
      $region13: #{tpu_custom_call.1} parent=5 // pred_check
        %p146 = pneg %p145
      $region14: #{tpu_custom_call.1} parent=5 // pred_check_branch
        %148 = sbr.rel (%p146) target = $region16
      $region15: #{tpu_custom_call.1} parent=5 // pred_region
        // Predicated region
        $region17: #{tpu_custom_call.1} parent=15 // pred_check
          %p149 = pneg %p44
        $region18: #{tpu_custom_call.1} parent=15 // pred_check_branch
          %151 = sbr.rel (%p149) target = $region20
        $region19: #{tpu_custom_call.1} parent=15 // pred_region
          %s152 = smul.u32 4, %s24
          %p153 = scmp.lt.s32.totalorder %s152, 23
          %s154 = scalar_select %p153, %s152, 23
          %s155 = smul.addr %s154, 8
          %s156 = scalar_lea.vmem %s2, %s155
          %s157 = smul.u32 4, %s24
        $region20: #{tpu_custom_call.1} parent=15 // pred_fallthru
          _
        // Predicated region
        $region21: #{tpu_custom_call.1} parent=15 // pred_check
          %p158 = pneg %p70
        $region22: #{tpu_custom_call.1} parent=15 // pred_check_branch
          %160 = sbr.rel (%p158) target = $region24
        $region23: #{tpu_custom_call.1} parent=15 // pred_region
          %s161 = sand.u32 %s60, 1
          %s162 = sand.u32 %s60, 1
          %s163 = smul.addr %s162, 256
          %s164 = scalar_lea.vmem [#allocation5], %s163
          %s165 = smul.u32 4, %s24
          %s166 = smul.addr %s165, 8
          %s167 = scalar_lea.vmem %s3, %s166
          // Predicated region
          $region25: #{tpu_custom_call.1} parent=23 // pred_check
            _
          $region26: #{tpu_custom_call.1} parent=23 // pred_check_branch
            %169 = sbr.rel (0) target = $region28
          $region27: #{tpu_custom_call.1} parent=23 // pred_region
            // Predicated region
            $region29: #{tpu_custom_call.1} parent=27 // pred_check
              _
            $region30: #{tpu_custom_call.1} parent=27 // pred_check_branch
              %171 = sbr.rel (0) target = $region32
            $region31: #{tpu_custom_call.1} parent=27 // pred_region
              loop: start=0, step=1, limit=1
              $region33: #{tpu_custom_call.1} parent=31 // loop_pre_header
                _
              $region34: #{tpu_custom_call.1} parent=31 // loop_header
                %s173 = sphi 0, %s177
                %p174 = scmp.ge.s32.totalorder %s173, 1
                %s178 = sphi %s167, %s167
                %s179 = sphi %s164, %s164
              $region35: #{tpu_custom_call.1} parent=31 // loop_header_branch
                %176 = sbr.rel (%p174) target = $region39
              $region36: #{tpu_custom_call.1} parent=31 // loop_body
                %v180 = vld [vmem:[%s178] sm:$0xff]
                %181 = vst [vmem:[%s179] sm:$0xff] %v180
                %v182 = vld [vmem:[%s178 + $0x8] sm:$0xff]
                %183 = vst [vmem:[%s179 + $0x8] sm:$0xff] %v182
                %v184 = vld [vmem:[%s178 + $0x10] sm:$0xff]
                %185 = vst [vmem:[%s179 + $0x10] sm:$0xff] %v184
                %v186 = vld [vmem:[%s178 + $0x18] sm:$0xff]
                %187 = vst [vmem:[%s179 + $0x18] sm:$0xff] %v186
                %v188 = vld [vmem:[%s178 + $0xc0] sm:$0xff]
                %189 = vst [vmem:[%s179 + $0x20] sm:$0xff] %v188
                %v190 = vld [vmem:[%s178 + $0xc8] sm:$0xff]
                %191 = vst [vmem:[%s179 + $0x28] sm:$0xff] %v190
                %v192 = vld [vmem:[%s178 + $0xd0] sm:$0xff]
                %193 = vst [vmem:[%s179 + $0x30] sm:$0xff] %v192
                %v194 = vld [vmem:[%s178 + $0xd8] sm:$0xff]
                %195 = vst [vmem:[%s179 + $0x38] sm:$0xff] %v194
                %v196 = vld [vmem:[%s178 + $0x180] sm:$0xff]
                %197 = vst [vmem:[%s179 + $0x40] sm:$0xff] %v196
                %v198 = vld [vmem:[%s178 + $0x188] sm:$0xff]
                %199 = vst [vmem:[%s179 + $0x48] sm:$0xff] %v198
                %v200 = vld [vmem:[%s178 + $0x190] sm:$0xff]
                %201 = vst [vmem:[%s179 + $0x50] sm:$0xff] %v200
                %v202 = vld [vmem:[%s178 + $0x198] sm:$0xff]
                %203 = vst [vmem:[%s179 + $0x58] sm:$0xff] %v202
                %v204 = vld [vmem:[%s178 + $0x240] sm:$0xff]
                %205 = vst [vmem:[%s179 + $0x60] sm:$0xff] %v204
                %v206 = vld [vmem:[%s178 + $0x248] sm:$0xff]
                %207 = vst [vmem:[%s179 + $0x68] sm:$0xff] %v206
                %v208 = vld [vmem:[%s178 + $0x250] sm:$0xff]
                %209 = vst [vmem:[%s179 + $0x70] sm:$0xff] %v208
                %v210 = vld [vmem:[%s178 + $0x258] sm:$0xff]
                %211 = vst [vmem:[%s179 + $0x78] sm:$0xff] %v210
                %v212 = vld [vmem:[%s178 + $0x300] sm:$0xff]
                %213 = vst [vmem:[%s179 + $0x80] sm:$0xff] %v212
                %v214 = vld [vmem:[%s178 + $0x308] sm:$0xff]
                %215 = vst [vmem:[%s179 + $0x88] sm:$0xff] %v214
                %v216 = vld [vmem:[%s178 + $0x310] sm:$0xff]
                %217 = vst [vmem:[%s179 + $0x90] sm:$0xff] %v216
                %v218 = vld [vmem:[%s178 + $0x318] sm:$0xff]
                %219 = vst [vmem:[%s179 + $0x98] sm:$0xff] %v218
                %v220 = vld [vmem:[%s178 + $0x3c0] sm:$0xff]
                %221 = vst [vmem:[%s179 + $0xa0] sm:$0xff] %v220
                %v222 = vld [vmem:[%s178 + $0x3c8] sm:$0xff]
                %223 = vst [vmem:[%s179 + $0xa8] sm:$0xff] %v222
                %v224 = vld [vmem:[%s178 + $0x3d0] sm:$0xff]
                %225 = vst [vmem:[%s179 + $0xb0] sm:$0xff] %v224
                %v226 = vld [vmem:[%s178 + $0x3d8] sm:$0xff]
                %227 = vst [vmem:[%s179 + $0xb8] sm:$0xff] %v226
                %v228 = vld [vmem:[%s178 + $0x480] sm:$0xff]
                %229 = vst [vmem:[%s179 + $0xc0] sm:$0xff] %v228
                %v230 = vld [vmem:[%s178 + $0x488] sm:$0xff]
                %231 = vst [vmem:[%s179 + $0xc8] sm:$0xff] %v230
                %v232 = vld [vmem:[%s178 + $0x490] sm:$0xff]
                %233 = vst [vmem:[%s179 + $0xd0] sm:$0xff] %v232
                %v234 = vld [vmem:[%s178 + $0x498] sm:$0xff]
                %235 = vst [vmem:[%s179 + $0xd8] sm:$0xff] %v234
                %v236 = vld [vmem:[%s178 + $0x540] sm:$0xff]
                %237 = vst [vmem:[%s179 + $0xe0] sm:$0xff] %v236
                %v238 = vld [vmem:[%s178 + $0x548] sm:$0xff]
                %239 = vst [vmem:[%s179 + $0xe8] sm:$0xff] %v238
                %v240 = vld [vmem:[%s178 + $0x550] sm:$0xff]
                %241 = vst [vmem:[%s179 + $0xf0] sm:$0xff] %v240
                %v242 = vld [vmem:[%s178 + $0x558] sm:$0xff]
                %243 = vst [vmem:[%s179 + $0xf8] sm:$0xff] %v242
              $region37: #{tpu_custom_call.1} parent=31 // loop_footer
                %s177 = sadd.s32 1, %s173
              $region38: #{tpu_custom_call.1} parent=31 // loop_footer_branch
                %172 = sbr.rel target = $region34
              $region39: #{tpu_custom_call.1} parent=31 // loop_exit
                _
            $region32: #{tpu_custom_call.1} parent=27 // pred_fallthru
              _
            // Predicated region
            $region40: #{tpu_custom_call.1} parent=27 // pred_check
              _
            $region41: #{tpu_custom_call.1} parent=27 // pred_check_branch
              %245 = sbr.rel target = $region43
            $region42: #{tpu_custom_call.1} parent=27 // pred_region
              _
            $region43: #{tpu_custom_call.1} parent=27 // pred_fallthru
              _
          $region28: #{tpu_custom_call.1} parent=23 // pred_fallthru
            _
          %246 = vnop
        $region24: #{tpu_custom_call.1} parent=15 // pred_fallthru
          _
        // Predicated region
        $region44: #{tpu_custom_call.1} parent=15 // pred_check
          %p247 = pneg %p96
        $region45: #{tpu_custom_call.1} parent=15 // pred_check_branch
          %249 = sbr.rel (%p247) target = $region47
        $region46: #{tpu_custom_call.1} parent=15 // pred_region
          %s250 = smul.u32 64, %s24
          %p251 = scmp.lt.s32.totalorder %s250, 383
          %s252 = scalar_select %p251, %s250, 383
          %s253 = smul.addr %s252, 8
          %s254 = scalar_lea.vmem %s4, %s253
          %s255 = smul.u32 64, %s24
        $region47: #{tpu_custom_call.1} parent=15 // pred_fallthru
          _
      $region16: #{tpu_custom_call.1} parent=5 // pred_fallthru
        _
      %p256 = scmp.le.s32.totalorder 1, %s24
      %p257 = scmp.lt.s32.totalorder %s24, 7
      %p258 = pnand %p256, %p257
      %p259 = pneg %p258
      // Predicated region
      $region48: #{tpu_custom_call.1} parent=5 // pred_check
        _
      $region49: #{tpu_custom_call.1} parent=5 // pred_check_branch
        %261 = sbr.rel (%p258) target = $region51
      $region50: #{tpu_custom_call.1} parent=5 // pred_region
        %s262 = ssub.s32 %s24, 1
        %s263 = sand.u32 %s63, 1
        %s264 = sand.u32 %s63, 1
        %s265 = smul.addr %s264, 256
        %s266 = scalar_lea.vmem [#allocation5], %s265
        // Predicated region
        $region52: #{tpu_custom_call.1} parent=50 // pred_check
          %p267 = pneg %p76
        $region53: #{tpu_custom_call.1} parent=50 // pred_check_branch
          %269 = sbr.rel (%p267) target = $region55
        $region54: #{tpu_custom_call.1} parent=50 // pred_region
          _
        $region55: #{tpu_custom_call.1} parent=50 // pred_fallthru
          _
        %s270 = smul.u32 4, %s29
        %p271 = scmp.lt.s32.totalorder %s270, 23
        %s272 = scalar_select %p271, %s270, 23
        %s273 = smul.addr %s272, 8
        %s274 = scalar_lea.vmem %s2, %s273
        %p275 = pneg %p50
        %p276 = pneg %p47
        %s277 = sand.u32 %s63, 1
        %s278 = sand.u32 %s63, 1
        %s279 = smul.addr %s278, 256
        %s280 = scalar_lea.vmem [#allocation5], %s279
        %p281 = pneg %p76
        %p282 = pneg %p73
        %s283 = smul.u32 64, %s29
        %p284 = scmp.lt.s32.totalorder %s283, 383
        %s285 = scalar_select %p284, %s283, 383
        %s286 = smul.addr %s285, 8
        %s287 = scalar_lea.vmem %s4, %s286
        %p288 = pneg %p102
        %p289 = pneg %p99
        %p290 = pneg %p130
        %p291 = pneg %p127
        %s292 = sand.u32 %s117, 1
        %s293 = scalar_lea.sflag [#allocation7], %s292
        %s294 = sand.u32 %s117, 1
        %s295 = smul.addr %s294, 8
        %s296 = scalar_lea.vmem [#allocation6], %s295
        %s297 = smul.u32 4, %s29
        %p298 = scmp.lt.s32.totalorder %s297, 23
        %s299 = scalar_select %p298, %s297, 23
        %s300 = smul.addr %s299, 8
        %s301 = scalar_lea.vmem %s2, %s300
        %s302 = smul.u32 4, %s29
        %s303 = smul.u32 4, %s29
        %s304 = smul.u32 64, %s29
        %p305 = scmp.lt.s32.totalorder %s304, 383
        %s306 = scalar_select %p305, %s304, 383
        %s307 = smul.addr %s306, 8
        %s308 = scalar_lea.vmem %s4, %s307
        %s309 = smul.u32 64, %s29
        %s310 = sld [smem:[#allocation3 + %s29]]
        %s311 = sld [smem:[#allocation4 + %s29]]
        %p312 = scmp.eq.s32.totalorder %s311, 1
        // Predicated region
        $region56: #{tpu_custom_call.1} parent=50 // pred_check
          %p313 = pneg %p312
        $region57: #{tpu_custom_call.1} parent=50 // pred_check_branch
          %315 = sbr.rel (%p313) target = $region59
        $region58: #{tpu_custom_call.1} parent=50 // pred_region
          %316 = vst [vmem:[%s296] sm:$0xff] 0.0
        $region59: #{tpu_custom_call.1} parent=50 // pred_fallthru
          _
        %v317 = vld [vmem:[%s301] sm:$0xff]
        %v318 = vld [vmem:[%s301 + $0x8] sm:$0xff]
        %v319 = vld [vmem:[%s301 + $0x10] sm:$0xff]
        %v320 = vld [vmem:[%s301 + $0x18] sm:$0xff]
        %v321 = vld [vmem:[%s266] sm:$0xff]
        %v322 = vld [vmem:[%s266 + $0x8] sm:$0xff]
        %v323 = vld [vmem:[%s266 + $0x10] sm:$0xff]
        %v324 = vld [vmem:[%s266 + $0x18] sm:$0xff]
        %v325 = vlaneseq
        %v326 = vshrl.u32 %v325, 7
        %v327 = vsub.s32 0, %v326
        %v328 = vrot.slane %v317, %v327
        %v329 = vlaneseq
        %v330 = vshrl.u32 %v329, 7
        %v331 = vsub.s32 0, %v330
        %v332 = vrot.slane %v318, %v331
        %v333 = vlaneseq
        %v334 = vshrl.u32 %v333, 7
        %v335 = vsub.s32 0, %v334
        %v336 = vrot.slane %v319, %v335
        %v337 = vlaneseq
        %v338 = vshrl.u32 %v337, 7
        %v339 = vsub.s32 0, %v338
        %v340 = vrot.slane %v320, %v339
        %v341 = vmul.f32 %v321, %v328
        %v342 = vmul.f32 %v322, %v332
        %v343 = vmul.f32 %v323, %v336
        %v344 = vmul.f32 %v324, %v340
        %s345 = scalar_lea.vmem %s266, 32 [#allocation5]
        %v346 = vld [vmem:[%s345] sm:$0xff]
        %v347 = vld [vmem:[%s345 + $0x8] sm:$0xff]
        %v348 = vld [vmem:[%s345 + $0x10] sm:$0xff]
        %v349 = vld [vmem:[%s345 + $0x18] sm:$0xff]
        %v350 = vlaneseq
        %v351 = vshrl.u32 %v350, 7
        %v352 = vsub.s32 1, %v351
        %v353 = vrot.slane %v317, %v352
        %v354 = vlaneseq
        %v355 = vshrl.u32 %v354, 7
        %v356 = vsub.s32 1, %v355
        %v357 = vrot.slane %v318, %v356
        %v358 = vlaneseq
        %v359 = vshrl.u32 %v358, 7
        %v360 = vsub.s32 1, %v359
        %v361 = vrot.slane %v319, %v360
        %v362 = vlaneseq
        %v363 = vshrl.u32 %v362, 7
        %v364 = vsub.s32 1, %v363
        %v365 = vrot.slane %v320, %v364
        %v366 = vmul.f32 %v346, %v353
        %v367 = vmul.f32 %v347, %v357
        %v368 = vmul.f32 %v348, %v361
        %v369 = vmul.f32 %v349, %v365
        %v370 = vadd.f32 %v341, %v366
        %v371 = vadd.f32 %v342, %v367
        %v372 = vadd.f32 %v343, %v368
        %v373 = vadd.f32 %v344, %v369
        %s374 = scalar_lea.vmem %s266, 64 [#allocation5]
        %v375 = vld [vmem:[%s374] sm:$0xff]
        %v376 = vld [vmem:[%s374 + $0x8] sm:$0xff]
        %v377 = vld [vmem:[%s374 + $0x10] sm:$0xff]
        %v378 = vld [vmem:[%s374 + $0x18] sm:$0xff]
        %v379 = vlaneseq
        %v380 = vshrl.u32 %v379, 7
        %v381 = vsub.s32 2, %v380
        %v382 = vrot.slane %v317, %v381
        %v383 = vlaneseq
        %v384 = vshrl.u32 %v383, 7
        %v385 = vsub.s32 2, %v384
        %v386 = vrot.slane %v318, %v385
        %v387 = vlaneseq
        %v388 = vshrl.u32 %v387, 7
        %v389 = vsub.s32 2, %v388
        %v390 = vrot.slane %v319, %v389
        %v391 = vlaneseq
        %v392 = vshrl.u32 %v391, 7
        %v393 = vsub.s32 2, %v392
        %v394 = vrot.slane %v320, %v393
        %v395 = vmul.f32 %v375, %v382
        %v396 = vmul.f32 %v376, %v386
        %v397 = vmul.f32 %v377, %v390
        %v398 = vmul.f32 %v378, %v394
        %v399 = vadd.f32 %v370, %v395
        %v400 = vadd.f32 %v371, %v396
        %v401 = vadd.f32 %v372, %v397
        %v402 = vadd.f32 %v373, %v398
        %s403 = scalar_lea.vmem %s266, 96 [#allocation5]
        %v404 = vld [vmem:[%s403] sm:$0xff]
        %v405 = vld [vmem:[%s403 + $0x8] sm:$0xff]
        %v406 = vld [vmem:[%s403 + $0x10] sm:$0xff]
        %v407 = vld [vmem:[%s403 + $0x18] sm:$0xff]
        %v408 = vlaneseq
        %v409 = vshrl.u32 %v408, 7
        %v410 = vsub.s32 3, %v409
        %v411 = vrot.slane %v317, %v410
        %v412 = vlaneseq
        %v413 = vshrl.u32 %v412, 7
        %v414 = vsub.s32 3, %v413
        %v415 = vrot.slane %v318, %v414
        %v416 = vlaneseq
        %v417 = vshrl.u32 %v416, 7
        %v418 = vsub.s32 3, %v417
        %v419 = vrot.slane %v319, %v418
        %v420 = vlaneseq
        %v421 = vshrl.u32 %v420, 7
        %v422 = vsub.s32 3, %v421
        %v423 = vrot.slane %v320, %v422
        %v424 = vmul.f32 %v404, %v411
        %v425 = vmul.f32 %v405, %v415
        %v426 = vmul.f32 %v406, %v419
        %v427 = vmul.f32 %v407, %v423
        %v428 = vadd.f32 %v399, %v424
        %v429 = vadd.f32 %v400, %v425
        %v430 = vadd.f32 %v401, %v426
        %v431 = vadd.f32 %v402, %v427
        %s432 = scalar_lea.vmem %s266, 128 [#allocation5]
        %v433 = vld [vmem:[%s432] sm:$0xff]
        %v434 = vld [vmem:[%s432 + $0x8] sm:$0xff]
        %v435 = vld [vmem:[%s432 + $0x10] sm:$0xff]
        %v436 = vld [vmem:[%s432 + $0x18] sm:$0xff]
        %v437 = vlaneseq
        %v438 = vshrl.u32 %v437, 7
        %v439 = vsub.s32 4, %v438
        %v440 = vrot.slane %v317, %v439
        %v441 = vlaneseq
        %v442 = vshrl.u32 %v441, 7
        %v443 = vsub.s32 4, %v442
        %v444 = vrot.slane %v318, %v443
        %v445 = vlaneseq
        %v446 = vshrl.u32 %v445, 7
        %v447 = vsub.s32 4, %v446
        %v448 = vrot.slane %v319, %v447
        %v449 = vlaneseq
        %v450 = vshrl.u32 %v449, 7
        %v451 = vsub.s32 4, %v450
        %v452 = vrot.slane %v320, %v451
        %v453 = vmul.f32 %v433, %v440
        %v454 = vmul.f32 %v434, %v444
        %v455 = vmul.f32 %v435, %v448
        %v456 = vmul.f32 %v436, %v452
        %v457 = vadd.f32 %v428, %v453
        %v458 = vadd.f32 %v429, %v454
        %v459 = vadd.f32 %v430, %v455
        %v460 = vadd.f32 %v431, %v456
        %s461 = scalar_lea.vmem %s266, 160 [#allocation5]
        %v462 = vld [vmem:[%s461] sm:$0xff]
        %v463 = vld [vmem:[%s461 + $0x8] sm:$0xff]
        %v464 = vld [vmem:[%s461 + $0x10] sm:$0xff]
        %v465 = vld [vmem:[%s461 + $0x18] sm:$0xff]
        %v466 = vlaneseq
        %v467 = vshrl.u32 %v466, 7
        %v468 = vsub.s32 5, %v467
        %v469 = vrot.slane %v317, %v468
        %v470 = vlaneseq
        %v471 = vshrl.u32 %v470, 7
        %v472 = vsub.s32 5, %v471
        %v473 = vrot.slane %v318, %v472
        %v474 = vlaneseq
        %v475 = vshrl.u32 %v474, 7
        %v476 = vsub.s32 5, %v475
        %v477 = vrot.slane %v319, %v476
        %v478 = vlaneseq
        %v479 = vshrl.u32 %v478, 7
        %v480 = vsub.s32 5, %v479
        %v481 = vrot.slane %v320, %v480
        %v482 = vmul.f32 %v462, %v469
        %v483 = vmul.f32 %v463, %v473
        %v484 = vmul.f32 %v464, %v477
        %v485 = vmul.f32 %v465, %v481
        %v486 = vadd.f32 %v457, %v482
        %v487 = vadd.f32 %v458, %v483
        %v488 = vadd.f32 %v459, %v484
        %v489 = vadd.f32 %v460, %v485
        %s490 = scalar_lea.vmem %s266, 192 [#allocation5]
        %v491 = vld [vmem:[%s490] sm:$0xff]
        %v492 = vld [vmem:[%s490 + $0x8] sm:$0xff]
        %v493 = vld [vmem:[%s490 + $0x10] sm:$0xff]
        %v494 = vld [vmem:[%s490 + $0x18] sm:$0xff]
        %v495 = vlaneseq
        %v496 = vshrl.u32 %v495, 7
        %v497 = vsub.s32 6, %v496
        %v498 = vrot.slane %v317, %v497
        %v499 = vlaneseq
        %v500 = vshrl.u32 %v499, 7
        %v501 = vsub.s32 6, %v500
        %v502 = vrot.slane %v318, %v501
        %v503 = vlaneseq
        %v504 = vshrl.u32 %v503, 7
        %v505 = vsub.s32 6, %v504
        %v506 = vrot.slane %v319, %v505
        %v507 = vlaneseq
        %v508 = vshrl.u32 %v507, 7
        %v509 = vsub.s32 6, %v508
        %v510 = vrot.slane %v320, %v509
        %v511 = vmul.f32 %v491, %v498
        %v512 = vmul.f32 %v492, %v502
        %v513 = vmul.f32 %v493, %v506
        %v514 = vmul.f32 %v494, %v510
        %v515 = vadd.f32 %v486, %v511
        %v516 = vadd.f32 %v487, %v512
        %v517 = vadd.f32 %v488, %v513
        %v518 = vadd.f32 %v489, %v514
        %s519 = scalar_lea.vmem %s266, 224 [#allocation5]
        %v520 = vld [vmem:[%s519] sm:$0xff]
        %v521 = vld [vmem:[%s519 + $0x8] sm:$0xff]
        %v522 = vld [vmem:[%s519 + $0x10] sm:$0xff]
        %v523 = vld [vmem:[%s519 + $0x18] sm:$0xff]
        %v524 = vlaneseq
        %v525 = vshrl.u32 %v524, 7
        %v526 = vsub.s32 7, %v525
        %v527 = vrot.slane %v317, %v526
        %v528 = vlaneseq
        %v529 = vshrl.u32 %v528, 7
        %v530 = vsub.s32 7, %v529
        %v531 = vrot.slane %v318, %v530
        %v532 = vlaneseq
        %v533 = vshrl.u32 %v532, 7
        %v534 = vsub.s32 7, %v533
        %v535 = vrot.slane %v319, %v534
        %v536 = vlaneseq
        %v537 = vshrl.u32 %v536, 7
        %v538 = vsub.s32 7, %v537
        %v539 = vrot.slane %v320, %v538
        %v540 = vmul.f32 %v520, %v527
        %v541 = vmul.f32 %v521, %v531
        %v542 = vmul.f32 %v522, %v535
        %v543 = vmul.f32 %v523, %v539
        %v544 = vadd.f32 %v515, %v540
        %v545 = vadd.f32 %v516, %v541
        %v546 = vadd.f32 %v517, %v542
        %v547 = vadd.f32 %v518, %v543
        %s548 = sld [smem:[#allocation3 + %s29]]
        %s549 = smul.u32 %s548, 128
        %v550 = vld [vmem:[%s308] sm:$0xff]
        %v551 = vld [vmem:[%s308 + $0x8] sm:$0xff]
        %v552 = vld [vmem:[%s308 + $0x10] sm:$0xff]
        %v553 = vld [vmem:[%s308 + $0x18] sm:$0xff]
        %v554 = vld [vmem:[%s308 + $0x20] sm:$0xff]
        %v555 = vld [vmem:[%s308 + $0x28] sm:$0xff]
        %v556 = vld [vmem:[%s308 + $0x30] sm:$0xff]
        %v557 = vld [vmem:[%s308 + $0x38] sm:$0xff]
        %v558 = vld [vmem:[%s308 + $0x40] sm:$0xff]
        %v559 = vld [vmem:[%s308 + $0x48] sm:$0xff]
        %v560 = vld [vmem:[%s308 + $0x50] sm:$0xff]
        %v561 = vld [vmem:[%s308 + $0x58] sm:$0xff]
        %v562 = vld [vmem:[%s308 + $0x60] sm:$0xff]
        %v563 = vld [vmem:[%s308 + $0x68] sm:$0xff]
        %v564 = vld [vmem:[%s308 + $0x70] sm:$0xff]
        %v565 = vld [vmem:[%s308 + $0x78] sm:$0xff]
        %v566 = vld [vmem:[%s308 + $0x80] sm:$0xff]
        %v567 = vld [vmem:[%s308 + $0x88] sm:$0xff]
        %v568 = vld [vmem:[%s308 + $0x90] sm:$0xff]
        %v569 = vld [vmem:[%s308 + $0x98] sm:$0xff]
        %v570 = vld [vmem:[%s308 + $0xa0] sm:$0xff]
        %v571 = vld [vmem:[%s308 + $0xa8] sm:$0xff]
        %v572 = vld [vmem:[%s308 + $0xb0] sm:$0xff]
        %v573 = vld [vmem:[%s308 + $0xb8] sm:$0xff]
        %v574 = vld [vmem:[%s308 + $0xc0] sm:$0xff]
        %v575 = vld [vmem:[%s308 + $0xc8] sm:$0xff]
        %v576 = vld [vmem:[%s308 + $0xd0] sm:$0xff]
        %v577 = vld [vmem:[%s308 + $0xd8] sm:$0xff]
        %v578 = vld [vmem:[%s308 + $0xe0] sm:$0xff]
        %v579 = vld [vmem:[%s308 + $0xe8] sm:$0xff]
        %v580 = vld [vmem:[%s308 + $0xf0] sm:$0xff]
        %v581 = vld [vmem:[%s308 + $0xf8] sm:$0xff]
        %v582 = vld [vmem:[%s308 + $0x100] sm:$0xff]
        %v583 = vld [vmem:[%s308 + $0x108] sm:$0xff]
        %v584 = vld [vmem:[%s308 + $0x110] sm:$0xff]
        %v585 = vld [vmem:[%s308 + $0x118] sm:$0xff]
        %v586 = vld [vmem:[%s308 + $0x120] sm:$0xff]
        %v587 = vld [vmem:[%s308 + $0x128] sm:$0xff]
        %v588 = vld [vmem:[%s308 + $0x130] sm:$0xff]
        %v589 = vld [vmem:[%s308 + $0x138] sm:$0xff]
        %v590 = vld [vmem:[%s308 + $0x140] sm:$0xff]
        %v591 = vld [vmem:[%s308 + $0x148] sm:$0xff]
        %v592 = vld [vmem:[%s308 + $0x150] sm:$0xff]
        %v593 = vld [vmem:[%s308 + $0x158] sm:$0xff]
        %v594 = vld [vmem:[%s308 + $0x160] sm:$0xff]
        %v595 = vld [vmem:[%s308 + $0x168] sm:$0xff]
        %v596 = vld [vmem:[%s308 + $0x170] sm:$0xff]
        %v597 = vld [vmem:[%s308 + $0x178] sm:$0xff]
        %v598 = vld [vmem:[%s308 + $0x180] sm:$0xff]
        %v599 = vld [vmem:[%s308 + $0x188] sm:$0xff]
        %v600 = vld [vmem:[%s308 + $0x190] sm:$0xff]
        %v601 = vld [vmem:[%s308 + $0x198] sm:$0xff]
        %v602 = vld [vmem:[%s308 + $0x1a0] sm:$0xff]
        %v603 = vld [vmem:[%s308 + $0x1a8] sm:$0xff]
        %v604 = vld [vmem:[%s308 + $0x1b0] sm:$0xff]
        %v605 = vld [vmem:[%s308 + $0x1b8] sm:$0xff]
        %v606 = vld [vmem:[%s308 + $0x1c0] sm:$0xff]
        %v607 = vld [vmem:[%s308 + $0x1c8] sm:$0xff]
        %v608 = vld [vmem:[%s308 + $0x1d0] sm:$0xff]
        %v609 = vld [vmem:[%s308 + $0x1d8] sm:$0xff]
        %v610 = vld [vmem:[%s308 + $0x1e0] sm:$0xff]
        %v611 = vld [vmem:[%s308 + $0x1e8] sm:$0xff]
        %v612 = vld [vmem:[%s308 + $0x1f0] sm:$0xff]
        %v613 = vld [vmem:[%s308 + $0x1f8] sm:$0xff]
        %v614 = vstv %s549
        %v615 = vsub.s32 %v550, %v614
        %v616 = vsub.s32 %v551, %v614
        %v617 = vsub.s32 %v552, %v614
        %v618 = vsub.s32 %v553, %v614
        %v619 = vsub.s32 %v554, %v614
        %v620 = vsub.s32 %v555, %v614
        %v621 = vsub.s32 %v556, %v614
        %v622 = vsub.s32 %v557, %v614
        %v623 = vsub.s32 %v558, %v614
        %v624 = vsub.s32 %v559, %v614
        %v625 = vsub.s32 %v560, %v614
        %v626 = vsub.s32 %v561, %v614
        %v627 = vsub.s32 %v562, %v614
        %v628 = vsub.s32 %v563, %v614
        %v629 = vsub.s32 %v564, %v614
        %v630 = vsub.s32 %v565, %v614
        %v631 = vsub.s32 %v566, %v614
        %v632 = vsub.s32 %v567, %v614
        %v633 = vsub.s32 %v568, %v614
        %v634 = vsub.s32 %v569, %v614
        %v635 = vsub.s32 %v570, %v614
        %v636 = vsub.s32 %v571, %v614
        %v637 = vsub.s32 %v572, %v614
        %v638 = vsub.s32 %v573, %v614
        %v639 = vsub.s32 %v574, %v614
        %v640 = vsub.s32 %v575, %v614
        %v641 = vsub.s32 %v576, %v614
        %v642 = vsub.s32 %v577, %v614
        %v643 = vsub.s32 %v578, %v614
        %v644 = vsub.s32 %v579, %v614
        %v645 = vsub.s32 %v580, %v614
        %v646 = vsub.s32 %v581, %v614
        %v647 = vsub.s32 %v582, %v614
        %v648 = vsub.s32 %v583, %v614
        %v649 = vsub.s32 %v584, %v614
        %v650 = vsub.s32 %v585, %v614
        %v651 = vsub.s32 %v586, %v614
        %v652 = vsub.s32 %v587, %v614
        %v653 = vsub.s32 %v588, %v614
        %v654 = vsub.s32 %v589, %v614
        %v655 = vsub.s32 %v590, %v614
        %v656 = vsub.s32 %v591, %v614
        %v657 = vsub.s32 %v592, %v614
        %v658 = vsub.s32 %v593, %v614
        %v659 = vsub.s32 %v594, %v614
        %v660 = vsub.s32 %v595, %v614
        %v661 = vsub.s32 %v596, %v614
        %v662 = vsub.s32 %v597, %v614
        %v663 = vsub.s32 %v598, %v614
        %v664 = vsub.s32 %v599, %v614
        %v665 = vsub.s32 %v600, %v614
        %v666 = vsub.s32 %v601, %v614
        %v667 = vsub.s32 %v602, %v614
        %v668 = vsub.s32 %v603, %v614
        %v669 = vsub.s32 %v604, %v614
        %v670 = vsub.s32 %v605, %v614
        %v671 = vsub.s32 %v606, %v614
        %v672 = vsub.s32 %v607, %v614
        %v673 = vsub.s32 %v608, %v614
        %v674 = vsub.s32 %v609, %v614
        %v675 = vsub.s32 %v610, %v614
        %v676 = vsub.s32 %v611, %v614
        %v677 = vsub.s32 %v612, %v614
        %v678 = vsub.s32 %v613, %v614
        %v679 = vlaneseq
        %v680 = vand.u32 %v679, 127
        %681 = vset.pattern.permute.xlu0 0
        %682 = vperm.xlu0 %681, %v615
        %v683 = vpop.permute.xlu0 %682
        %684 = vset.pattern.permute.xlu0 0
        %685 = vperm.xlu0 %684, %v616
        %v686 = vpop.permute.xlu0 %685
        %687 = vset.pattern.permute.xlu0 0
        %688 = vperm.xlu0 %687, %v617
        %v689 = vpop.permute.xlu0 %688
        %690 = vset.pattern.permute.xlu0 0
        %691 = vperm.xlu0 %690, %v618
        %v692 = vpop.permute.xlu0 %691
        %693 = vset.pattern.permute.xlu0 0
        %694 = vperm.xlu0 %693, %v619
        %v695 = vpop.permute.xlu0 %694
        %696 = vset.pattern.permute.xlu0 0
        %697 = vperm.xlu0 %696, %v620
        %v698 = vpop.permute.xlu0 %697
        %699 = vset.pattern.permute.xlu0 0
        %700 = vperm.xlu0 %699, %v621
        %v701 = vpop.permute.xlu0 %700
        %702 = vset.pattern.permute.xlu0 0
        %703 = vperm.xlu0 %702, %v622
        %v704 = vpop.permute.xlu0 %703
        %705 = vset.pattern.permute.xlu0 0
        %706 = vperm.xlu0 %705, %v623
        %v707 = vpop.permute.xlu0 %706
        %708 = vset.pattern.permute.xlu0 0
        %709 = vperm.xlu0 %708, %v624
        %v710 = vpop.permute.xlu0 %709
        %711 = vset.pattern.permute.xlu0 0
        %712 = vperm.xlu0 %711, %v625
        %v713 = vpop.permute.xlu0 %712
        %714 = vset.pattern.permute.xlu0 0
        %715 = vperm.xlu0 %714, %v626
        %v716 = vpop.permute.xlu0 %715
        %717 = vset.pattern.permute.xlu0 0
        %718 = vperm.xlu0 %717, %v627
        %v719 = vpop.permute.xlu0 %718
        %720 = vset.pattern.permute.xlu0 0
        %721 = vperm.xlu0 %720, %v628
        %v722 = vpop.permute.xlu0 %721
        %723 = vset.pattern.permute.xlu0 0
        %724 = vperm.xlu0 %723, %v629
        %v725 = vpop.permute.xlu0 %724
        %726 = vset.pattern.permute.xlu0 0
        %727 = vperm.xlu0 %726, %v630
        %v728 = vpop.permute.xlu0 %727
        %729 = vset.pattern.permute.xlu0 0
        %730 = vperm.xlu0 %729, %v631
        %v731 = vpop.permute.xlu0 %730
        %732 = vset.pattern.permute.xlu0 0
        %733 = vperm.xlu0 %732, %v632
        %v734 = vpop.permute.xlu0 %733
        %735 = vset.pattern.permute.xlu0 0
        %736 = vperm.xlu0 %735, %v633
        %v737 = vpop.permute.xlu0 %736
        %738 = vset.pattern.permute.xlu0 0
        %739 = vperm.xlu0 %738, %v634
        %v740 = vpop.permute.xlu0 %739
        %741 = vset.pattern.permute.xlu0 0
        %742 = vperm.xlu0 %741, %v635
        %v743 = vpop.permute.xlu0 %742
        %744 = vset.pattern.permute.xlu0 0
        %745 = vperm.xlu0 %744, %v636
        %v746 = vpop.permute.xlu0 %745
        %747 = vset.pattern.permute.xlu0 0
        %748 = vperm.xlu0 %747, %v637
        %v749 = vpop.permute.xlu0 %748
        %750 = vset.pattern.permute.xlu0 0
        %751 = vperm.xlu0 %750, %v638
        %v752 = vpop.permute.xlu0 %751
        %753 = vset.pattern.permute.xlu0 0
        %754 = vperm.xlu0 %753, %v639
        %v755 = vpop.permute.xlu0 %754
        %756 = vset.pattern.permute.xlu0 0
        %757 = vperm.xlu0 %756, %v640
        %v758 = vpop.permute.xlu0 %757
        %759 = vset.pattern.permute.xlu0 0
        %760 = vperm.xlu0 %759, %v641
        %v761 = vpop.permute.xlu0 %760
        %762 = vset.pattern.permute.xlu0 0
        %763 = vperm.xlu0 %762, %v642
        %v764 = vpop.permute.xlu0 %763
        %765 = vset.pattern.permute.xlu0 0
        %766 = vperm.xlu0 %765, %v643
        %v767 = vpop.permute.xlu0 %766
        %768 = vset.pattern.permute.xlu0 0
        %769 = vperm.xlu0 %768, %v644
        %v770 = vpop.permute.xlu0 %769
        %771 = vset.pattern.permute.xlu0 0
        %772 = vperm.xlu0 %771, %v645
        %v773 = vpop.permute.xlu0 %772
        %774 = vset.pattern.permute.xlu0 0
        %775 = vperm.xlu0 %774, %v646
        %v776 = vpop.permute.xlu0 %775
        %777 = vset.pattern.permute.xlu0 0
        %778 = vperm.xlu0 %777, %v647
        %v779 = vpop.permute.xlu0 %778
        %780 = vset.pattern.permute.xlu0 0
        %781 = vperm.xlu0 %780, %v648
        %v782 = vpop.permute.xlu0 %781
        %783 = vset.pattern.permute.xlu0 0
        %784 = vperm.xlu0 %783, %v649
        %v785 = vpop.permute.xlu0 %784
        %786 = vset.pattern.permute.xlu0 0
        %787 = vperm.xlu0 %786, %v650
        %v788 = vpop.permute.xlu0 %787
        %789 = vset.pattern.permute.xlu0 0
        %790 = vperm.xlu0 %789, %v651
        %v791 = vpop.permute.xlu0 %790
        %792 = vset.pattern.permute.xlu0 0
        %793 = vperm.xlu0 %792, %v652
        %v794 = vpop.permute.xlu0 %793
        %795 = vset.pattern.permute.xlu0 0
        %796 = vperm.xlu0 %795, %v653
        %v797 = vpop.permute.xlu0 %796
        %798 = vset.pattern.permute.xlu0 0
        %799 = vperm.xlu0 %798, %v654
        %v800 = vpop.permute.xlu0 %799
        %801 = vset.pattern.permute.xlu0 0
        %802 = vperm.xlu0 %801, %v655
        %v803 = vpop.permute.xlu0 %802
        %804 = vset.pattern.permute.xlu0 0
        %805 = vperm.xlu0 %804, %v656
        %v806 = vpop.permute.xlu0 %805
        %807 = vset.pattern.permute.xlu0 0
        %808 = vperm.xlu0 %807, %v657
        %v809 = vpop.permute.xlu0 %808
        %810 = vset.pattern.permute.xlu0 0
        %811 = vperm.xlu0 %810, %v658
        %v812 = vpop.permute.xlu0 %811
        %813 = vset.pattern.permute.xlu0 0
        %814 = vperm.xlu0 %813, %v659
        %v815 = vpop.permute.xlu0 %814
        %816 = vset.pattern.permute.xlu0 0
        %817 = vperm.xlu0 %816, %v660
        %v818 = vpop.permute.xlu0 %817
        %819 = vset.pattern.permute.xlu0 0
        %820 = vperm.xlu0 %819, %v661
        %v821 = vpop.permute.xlu0 %820
        %822 = vset.pattern.permute.xlu0 0
        %823 = vperm.xlu0 %822, %v662
        %v824 = vpop.permute.xlu0 %823
        %825 = vset.pattern.permute.xlu0 0
        %826 = vperm.xlu0 %825, %v663
        %v827 = vpop.permute.xlu0 %826
        %828 = vset.pattern.permute.xlu0 0
        %829 = vperm.xlu0 %828, %v664
        %v830 = vpop.permute.xlu0 %829
        %831 = vset.pattern.permute.xlu0 0
        %832 = vperm.xlu0 %831, %v665
        %v833 = vpop.permute.xlu0 %832
        %834 = vset.pattern.permute.xlu0 0
        %835 = vperm.xlu0 %834, %v666
        %v836 = vpop.permute.xlu0 %835
        %837 = vset.pattern.permute.xlu0 0
        %838 = vperm.xlu0 %837, %v667
        %v839 = vpop.permute.xlu0 %838
        %840 = vset.pattern.permute.xlu0 0
        %841 = vperm.xlu0 %840, %v668
        %v842 = vpop.permute.xlu0 %841
        %843 = vset.pattern.permute.xlu0 0
        %844 = vperm.xlu0 %843, %v669
        %v845 = vpop.permute.xlu0 %844
        %846 = vset.pattern.permute.xlu0 0
        %847 = vperm.xlu0 %846, %v670
        %v848 = vpop.permute.xlu0 %847
        %849 = vset.pattern.permute.xlu0 0
        %850 = vperm.xlu0 %849, %v671
        %v851 = vpop.permute.xlu0 %850
        %852 = vset.pattern.permute.xlu0 0
        %853 = vperm.xlu0 %852, %v672
        %v854 = vpop.permute.xlu0 %853
        %855 = vset.pattern.permute.xlu0 0
        %856 = vperm.xlu0 %855, %v673
        %v857 = vpop.permute.xlu0 %856
        %858 = vset.pattern.permute.xlu0 0
        %859 = vperm.xlu0 %858, %v674
        %v860 = vpop.permute.xlu0 %859
        %861 = vset.pattern.permute.xlu0 0
        %862 = vperm.xlu0 %861, %v675
        %v863 = vpop.permute.xlu0 %862
        %864 = vset.pattern.permute.xlu0 0
        %865 = vperm.xlu0 %864, %v676
        %v866 = vpop.permute.xlu0 %865
        %867 = vset.pattern.permute.xlu0 0
        %868 = vperm.xlu0 %867, %v677
        %v869 = vpop.permute.xlu0 %868
        %870 = vset.pattern.permute.xlu0 0
        %871 = vperm.xlu0 %870, %v678
        %v872 = vpop.permute.xlu0 %871
        %vm873 = vcmp.eq.s32.totalorder %v680, %v683
        %vm874 = vcmp.eq.s32.totalorder %v680, %v686
        %vm875 = vcmp.eq.s32.totalorder %v680, %v689
        %vm876 = vcmp.eq.s32.totalorder %v680, %v692
        %vm877 = vcmp.eq.s32.totalorder %v680, %v695
        %vm878 = vcmp.eq.s32.totalorder %v680, %v698
        %vm879 = vcmp.eq.s32.totalorder %v680, %v701
        %vm880 = vcmp.eq.s32.totalorder %v680, %v704
        %vm881 = vcmp.eq.s32.totalorder %v680, %v707
        %vm882 = vcmp.eq.s32.totalorder %v680, %v710
        %vm883 = vcmp.eq.s32.totalorder %v680, %v713
        %vm884 = vcmp.eq.s32.totalorder %v680, %v716
        %vm885 = vcmp.eq.s32.totalorder %v680, %v719
        %vm886 = vcmp.eq.s32.totalorder %v680, %v722
        %vm887 = vcmp.eq.s32.totalorder %v680, %v725
        %vm888 = vcmp.eq.s32.totalorder %v680, %v728
        %vm889 = vcmp.eq.s32.totalorder %v680, %v731
        %vm890 = vcmp.eq.s32.totalorder %v680, %v734
        %vm891 = vcmp.eq.s32.totalorder %v680, %v737
        %vm892 = vcmp.eq.s32.totalorder %v680, %v740
        %vm893 = vcmp.eq.s32.totalorder %v680, %v743
        %vm894 = vcmp.eq.s32.totalorder %v680, %v746
        %vm895 = vcmp.eq.s32.totalorder %v680, %v749
        %vm896 = vcmp.eq.s32.totalorder %v680, %v752
        %vm897 = vcmp.eq.s32.totalorder %v680, %v755
        %vm898 = vcmp.eq.s32.totalorder %v680, %v758
        %vm899 = vcmp.eq.s32.totalorder %v680, %v761
        %vm900 = vcmp.eq.s32.totalorder %v680, %v764
        %vm901 = vcmp.eq.s32.totalorder %v680, %v767
        %vm902 = vcmp.eq.s32.totalorder %v680, %v770
        %vm903 = vcmp.eq.s32.totalorder %v680, %v773
        %vm904 = vcmp.eq.s32.totalorder %v680, %v776
        %vm905 = vcmp.eq.s32.totalorder %v680, %v779
        %vm906 = vcmp.eq.s32.totalorder %v680, %v782
        %vm907 = vcmp.eq.s32.totalorder %v680, %v785
        %vm908 = vcmp.eq.s32.totalorder %v680, %v788
        %vm909 = vcmp.eq.s32.totalorder %v680, %v791
        %vm910 = vcmp.eq.s32.totalorder %v680, %v794
        %vm911 = vcmp.eq.s32.totalorder %v680, %v797
        %vm912 = vcmp.eq.s32.totalorder %v680, %v800
        %vm913 = vcmp.eq.s32.totalorder %v680, %v803
        %vm914 = vcmp.eq.s32.totalorder %v680, %v806
        %vm915 = vcmp.eq.s32.totalorder %v680, %v809
        %vm916 = vcmp.eq.s32.totalorder %v680, %v812
        %vm917 = vcmp.eq.s32.totalorder %v680, %v815
        %vm918 = vcmp.eq.s32.totalorder %v680, %v818
        %vm919 = vcmp.eq.s32.totalorder %v680, %v821
        %vm920 = vcmp.eq.s32.totalorder %v680, %v824
        %vm921 = vcmp.eq.s32.totalorder %v680, %v827
        %vm922 = vcmp.eq.s32.totalorder %v680, %v830
        %vm923 = vcmp.eq.s32.totalorder %v680, %v833
        %vm924 = vcmp.eq.s32.totalorder %v680, %v836
        %vm925 = vcmp.eq.s32.totalorder %v680, %v839
        %vm926 = vcmp.eq.s32.totalorder %v680, %v842
        %vm927 = vcmp.eq.s32.totalorder %v680, %v845
        %vm928 = vcmp.eq.s32.totalorder %v680, %v848
        %vm929 = vcmp.eq.s32.totalorder %v680, %v851
        %vm930 = vcmp.eq.s32.totalorder %v680, %v854
        %vm931 = vcmp.eq.s32.totalorder %v680, %v857
        %vm932 = vcmp.eq.s32.totalorder %v680, %v860
        %vm933 = vcmp.eq.s32.totalorder %v680, %v863
        %vm934 = vcmp.eq.s32.totalorder %v680, %v866
        %vm935 = vcmp.eq.s32.totalorder %v680, %v869
        %vm936 = vcmp.eq.s32.totalorder %v680, %v872
        %v937 = vsel %vm873, 1, 0
        %v938 = vsel %vm874, 1, 0
        %v939 = vsel %vm875, 1, 0
        %v940 = vsel %vm876, 1, 0
        %v941 = vsel %vm877, 1, 0
        %v942 = vsel %vm878, 1, 0
        %v943 = vsel %vm879, 1, 0
        %v944 = vsel %vm880, 1, 0
        %v945 = vsel %vm881, 1, 0
        %v946 = vsel %vm882, 1, 0
        %v947 = vsel %vm883, 1, 0
        %v948 = vsel %vm884, 1, 0
        %v949 = vsel %vm885, 1, 0
        %v950 = vsel %vm886, 1, 0
        %v951 = vsel %vm887, 1, 0
        %v952 = vsel %vm888, 1, 0
        %v953 = vsel %vm889, 1, 0
        %v954 = vsel %vm890, 1, 0
        %v955 = vsel %vm891, 1, 0
        %v956 = vsel %vm892, 1, 0
        %v957 = vsel %vm893, 1, 0
        %v958 = vsel %vm894, 1, 0
        %v959 = vsel %vm895, 1, 0
        %v960 = vsel %vm896, 1, 0
        %v961 = vsel %vm897, 1, 0
        %v962 = vsel %vm898, 1, 0
        %v963 = vsel %vm899, 1, 0
        %v964 = vsel %vm900, 1, 0
        %v965 = vsel %vm901, 1, 0
        %v966 = vsel %vm902, 1, 0
        %v967 = vsel %vm903, 1, 0
        %v968 = vsel %vm904, 1, 0
        %v969 = vsel %vm905, 1, 0
        %v970 = vsel %vm906, 1, 0
        %v971 = vsel %vm907, 1, 0
        %v972 = vsel %vm908, 1, 0
        %v973 = vsel %vm909, 1, 0
        %v974 = vsel %vm910, 1, 0
        %v975 = vsel %vm911, 1, 0
        %v976 = vsel %vm912, 1, 0
        %v977 = vsel %vm913, 1, 0
        %v978 = vsel %vm914, 1, 0
        %v979 = vsel %vm915, 1, 0
        %v980 = vsel %vm916, 1, 0
        %v981 = vsel %vm917, 1, 0
        %v982 = vsel %vm918, 1, 0
        %v983 = vsel %vm919, 1, 0
        %v984 = vsel %vm920, 1, 0
        %v985 = vsel %vm921, 1, 0
        %v986 = vsel %vm922, 1, 0
        %v987 = vsel %vm923, 1, 0
        %v988 = vsel %vm924, 1, 0
        %v989 = vsel %vm925, 1, 0
        %v990 = vsel %vm926, 1, 0
        %v991 = vsel %vm927, 1, 0
        %v992 = vsel %vm928, 1, 0
        %v993 = vsel %vm929, 1, 0
        %v994 = vsel %vm930, 1, 0
        %v995 = vsel %vm931, 1, 0
        %v996 = vsel %vm932, 1, 0
        %v997 = vsel %vm933, 1, 0
        %v998 = vsel %vm934, 1, 0
        %v999 = vsel %vm935, 1, 0
        %v1000 = vsel %vm936, 1, 0
        %v1001 = vcvt.s32.f32 %v937
        %v1002 = vcvt.s32.f32 %v938
        %v1003 = vcvt.s32.f32 %v939
        %v1004 = vcvt.s32.f32 %v940
        %v1005 = vcvt.s32.f32 %v941
        %v1006 = vcvt.s32.f32 %v942
        %v1007 = vcvt.s32.f32 %v943
        %v1008 = vcvt.s32.f32 %v944
        %v1009 = vcvt.s32.f32 %v945
        %v1010 = vcvt.s32.f32 %v946
        %v1011 = vcvt.s32.f32 %v947
        %v1012 = vcvt.s32.f32 %v948
        %v1013 = vcvt.s32.f32 %v949
        %v1014 = vcvt.s32.f32 %v950
        %v1015 = vcvt.s32.f32 %v951
        %v1016 = vcvt.s32.f32 %v952
        %v1017 = vcvt.s32.f32 %v953
        %v1018 = vcvt.s32.f32 %v954
        %v1019 = vcvt.s32.f32 %v955
        %v1020 = vcvt.s32.f32 %v956
        %v1021 = vcvt.s32.f32 %v957
        %v1022 = vcvt.s32.f32 %v958
        %v1023 = vcvt.s32.f32 %v959
        %v1024 = vcvt.s32.f32 %v960
        %v1025 = vcvt.s32.f32 %v961
        %v1026 = vcvt.s32.f32 %v962
        %v1027 = vcvt.s32.f32 %v963
        %v1028 = vcvt.s32.f32 %v964
        %v1029 = vcvt.s32.f32 %v965
        %v1030 = vcvt.s32.f32 %v966
        %v1031 = vcvt.s32.f32 %v967
        %v1032 = vcvt.s32.f32 %v968
        %v1033 = vcvt.s32.f32 %v969
        %v1034 = vcvt.s32.f32 %v970
        %v1035 = vcvt.s32.f32 %v971
        %v1036 = vcvt.s32.f32 %v972
        %v1037 = vcvt.s32.f32 %v973
        %v1038 = vcvt.s32.f32 %v974
        %v1039 = vcvt.s32.f32 %v975
        %v1040 = vcvt.s32.f32 %v976
        %v1041 = vcvt.s32.f32 %v977
        %v1042 = vcvt.s32.f32 %v978
        %v1043 = vcvt.s32.f32 %v979
        %v1044 = vcvt.s32.f32 %v980
        %v1045 = vcvt.s32.f32 %v981
        %v1046 = vcvt.s32.f32 %v982
        %v1047 = vcvt.s32.f32 %v983
        %v1048 = vcvt.s32.f32 %v984
        %v1049 = vcvt.s32.f32 %v985
        %v1050 = vcvt.s32.f32 %v986
        %v1051 = vcvt.s32.f32 %v987
        %v1052 = vcvt.s32.f32 %v988
        %v1053 = vcvt.s32.f32 %v989
        %v1054 = vcvt.s32.f32 %v990
        %v1055 = vcvt.s32.f32 %v991
        %v1056 = vcvt.s32.f32 %v992
        %v1057 = vcvt.s32.f32 %v993
        %v1058 = vcvt.s32.f32 %v994
        %v1059 = vcvt.s32.f32 %v995
        %v1060 = vcvt.s32.f32 %v996
        %v1061 = vcvt.s32.f32 %v997
        %v1062 = vcvt.s32.f32 %v998
        %v1063 = vcvt.s32.f32 %v999
        %v1064 = vcvt.s32.f32 %v1000
        %v1065 = vld [vmem:[%s296] sm:$0xff]
        %1066 = vmatprep.subr.mxu0 0.0
        %1067 = vmatpush1.msra.mxu0 %v1001
        %1068 = vmatprep.subr.mxu0 0.0
        %1069 = vmatpush1.msra.mxu0 %v1002
        %1070 = vmatprep.subr.mxu0 0.0
        %1071 = vmatpush1.msra.mxu0 %v1003
        %1072 = vmatprep.subr.mxu0 0.0
        %1073 = vmatpush1.msra.mxu0 %v1004
        %1074 = vmatprep.subr.mxu0 0.0
        %1075 = vmatpush1.msra.mxu0 %v1005
        %1076 = vmatprep.subr.mxu0 0.0
        %1077 = vmatpush1.msra.mxu0 %v1006
        %1078 = vmatprep.subr.mxu0 0.0
        %1079 = vmatpush1.msra.mxu0 %v1007
        %1080 = vmatprep.subr.mxu0 0.0
        %1081 = vmatpush1.msra.mxu0 %v1008
        %1082 = vmatprep.subr.mxu0 0.0
        %1083 = vmatpush1.msra.mxu0 %v1009
        %1084 = vmatprep.subr.mxu0 0.0
        %1085 = vmatpush1.msra.mxu0 %v1010
        %1086 = vmatprep.subr.mxu0 0.0
        %1087 = vmatpush1.msra.mxu0 %v1011
        %1088 = vmatprep.subr.mxu0 0.0
        %1089 = vmatpush1.msra.mxu0 %v1012
        %1090 = vmatprep.subr.mxu0 0.0
        %1091 = vmatpush1.msra.mxu0 %v1013
        %1092 = vmatprep.subr.mxu0 0.0
        %1093 = vmatpush1.msra.mxu0 %v1014
        %1094 = vmatprep.subr.mxu0 0.0
        %1095 = vmatpush1.msra.mxu0 %v1015
        %1096 = vmatprep.subr.mxu0 0.0
        %1097 = vmatpush1.msra.mxu0 %v1016
        %1098 = vmatprep.subr.mxu0 0.0
        %1099 = vmatpush1.msra.mxu0 %v1017
        %1100 = vmatprep.subr.mxu0 0.0
        %1101 = vmatpush1.msra.mxu0 %v1018
        %1102 = vmatprep.subr.mxu0 0.0
        %1103 = vmatpush1.msra.mxu0 %v1019
        %1104 = vmatprep.subr.mxu0 0.0
        %1105 = vmatpush1.msra.mxu0 %v1020
        %1106 = vmatprep.subr.mxu0 0.0
        %1107 = vmatpush1.msra.mxu0 %v1021
        %1108 = vmatprep.subr.mxu0 0.0
        %1109 = vmatpush1.msra.mxu0 %v1022
        %1110 = vmatprep.subr.mxu0 0.0
        %1111 = vmatpush1.msra.mxu0 %v1023
        %1112 = vmatprep.subr.mxu0 0.0
        %1113 = vmatpush1.msra.mxu0 %v1024
        %1114 = vmatprep.subr.mxu0 0.0
        %1115 = vmatpush1.msra.mxu0 %v1025
        %1116 = vmatprep.subr.mxu0 0.0
        %1117 = vmatpush1.msra.mxu0 %v1026
        %1118 = vmatprep.subr.mxu0 0.0
        %1119 = vmatpush1.msra.mxu0 %v1027
        %1120 = vmatprep.subr.mxu0 0.0
        %1121 = vmatpush1.msra.mxu0 %v1028
        %1122 = vmatprep.subr.mxu0 0.0
        %1123 = vmatpush1.msra.mxu0 %v1029
        %1124 = vmatprep.subr.mxu0 0.0
        %1125 = vmatpush1.msra.mxu0 %v1030
        %1126 = vmatprep.subr.mxu0 0.0
        %1127 = vmatpush1.msra.mxu0 %v1031
        %1128 = vmatprep.subr.mxu0 0.0
        %1129 = vmatpush1.msra.mxu0 %v1032
        %1130 = vmatprep.mubr.f32.mxu0 %v545
        %1131 = vmatmul.mubr.f32.gmra.mrb[0].mxu0 %v544
        %v1132 = vpop.f32.mrb[0].mxu0
        %v1133 = vadd.f32 0.0, %v1132
        %v1134 = vpop.f32.mrb[0].mxu0
        %1135 = vdwg.mxu0
        %1136 = vmatprep.subr.mxu0 0.0
        %1137 = vmatpush1.msra.mxu0 %v1033
        %1138 = vmatprep.subr.mxu0 0.0
        %1139 = vmatpush1.msra.mxu0 %v1034
        %1140 = vmatprep.subr.mxu0 0.0
        %1141 = vmatpush1.msra.mxu0 %v1035
        %1142 = vmatprep.subr.mxu0 0.0
        %1143 = vmatpush1.msra.mxu0 %v1036
        %1144 = vmatprep.subr.mxu0 0.0
        %1145 = vmatpush1.msra.mxu0 %v1037
        %1146 = vmatprep.subr.mxu0 0.0
        %1147 = vmatpush1.msra.mxu0 %v1038
        %1148 = vmatprep.subr.mxu0 0.0
        %1149 = vmatpush1.msra.mxu0 %v1039
        %1150 = vmatprep.subr.mxu0 0.0
        %1151 = vmatpush1.msra.mxu0 %v1040
        %1152 = vmatprep.subr.mxu0 0.0
        %1153 = vmatpush1.msra.mxu0 %v1041
        %1154 = vmatprep.subr.mxu0 0.0
        %1155 = vmatpush1.msra.mxu0 %v1042
        %1156 = vmatprep.subr.mxu0 0.0
        %1157 = vmatpush1.msra.mxu0 %v1043
        %1158 = vmatprep.subr.mxu0 0.0
        %1159 = vmatpush1.msra.mxu0 %v1044
        %1160 = vmatprep.subr.mxu0 0.0
        %1161 = vmatpush1.msra.mxu0 %v1045
        %1162 = vmatprep.subr.mxu0 0.0
        %1163 = vmatpush1.msra.mxu0 %v1046
        %1164 = vmatprep.subr.mxu0 0.0
        %1165 = vmatpush1.msra.mxu0 %v1047
        %1166 = vmatprep.subr.mxu0 0.0
        %1167 = vmatpush1.msra.mxu0 %v1048
        %1168 = vmatprep.subr.mxu0 0.0
        %1169 = vmatpush1.msra.mxu0 %v1049
        %1170 = vmatprep.subr.mxu0 0.0
        %1171 = vmatpush1.msra.mxu0 %v1050
        %1172 = vmatprep.subr.mxu0 0.0
        %1173 = vmatpush1.msra.mxu0 %v1051
        %1174 = vmatprep.subr.mxu0 0.0
        %1175 = vmatpush1.msra.mxu0 %v1052
        %1176 = vmatprep.subr.mxu0 0.0
        %1177 = vmatpush1.msra.mxu0 %v1053
        %1178 = vmatprep.subr.mxu0 0.0
        %1179 = vmatpush1.msra.mxu0 %v1054
        %1180 = vmatprep.subr.mxu0 0.0
        %1181 = vmatpush1.msra.mxu0 %v1055
        %1182 = vmatprep.subr.mxu0 0.0
        %1183 = vmatpush1.msra.mxu0 %v1056
        %1184 = vmatprep.subr.mxu0 0.0
        %1185 = vmatpush1.msra.mxu0 %v1057
        %1186 = vmatprep.subr.mxu0 0.0
        %1187 = vmatpush1.msra.mxu0 %v1058
        %1188 = vmatprep.subr.mxu0 0.0
        %1189 = vmatpush1.msra.mxu0 %v1059
        %1190 = vmatprep.subr.mxu0 0.0
        %1191 = vmatpush1.msra.mxu0 %v1060
        %1192 = vmatprep.subr.mxu0 0.0
        %1193 = vmatpush1.msra.mxu0 %v1061
        %1194 = vmatprep.subr.mxu0 0.0
        %1195 = vmatpush1.msra.mxu0 %v1062
        %1196 = vmatprep.subr.mxu0 0.0
        %1197 = vmatpush1.msra.mxu0 %v1063
        %1198 = vmatprep.subr.mxu0 0.0
        %1199 = vmatpush1.msra.mxu0 %v1064
        %1200 = vmatprep.mubr.f32.mxu0 %v547
        %1201 = vmatmul.mubr.f32.gmra.mrb[0].mxu0 %v546
        %v1202 = vpop.f32.mrb[0].mxu0
        %v1203 = vadd.f32 %v1133, %v1202
        %v1204 = vpop.f32.mrb[0].mxu0
        %1205 = vdwg.mxu0
        %v1206 = vadd.f32 %v1065, %v1203
        %1207 = vst [vmem:[%s296] sm:$0xff] %v1206
        %s1208 = sand.u32 %s117, 1
        %s1209 = scalar_lea.sflag [#allocation7], %s1208
        %s1210 = sand.u32 %s117, 1
        %s1211 = smul.addr %s1210, 8
        %s1212 = scalar_lea.vmem [#allocation6], %s1211
        // Predicated region
        $region60: #{tpu_custom_call.1} parent=50 // pred_check
          %p1213 = pneg %p127
        $region61: #{tpu_custom_call.1} parent=50 // pred_check_branch
          %1215 = sbr.rel (%p1213) target = $region63
        $region62: #{tpu_custom_call.1} parent=50 // pred_region
          %s1216 = sld [smem:[#allocation3 + %s29]]
          %s1218 = ssub.s32 128, 128
          %1219 = vsyncadd %s1209, %s1218
          %s1220 = smul.addr %s1216, 128
          %s1221 = scalar_lea.hbm %s5, %s1220
          %s1223 = sshll.u32 %s1212, 4
          %s1224 = int_to_ptr.vmem [resolvable:$true] %s1223
          %1226 = dma.vmem_to_hbm [thread:$0]  %s1224, 128, %s1221, %s1209
        $region63: #{tpu_custom_call.1} parent=50 // pred_fallthru
          _
      $region51: #{tpu_custom_call.1} parent=5 // pred_fallthru
        _
      %p1227 = scmp.le.s32.totalorder 2, %s24
      // Predicated region
      $region64: #{tpu_custom_call.1} parent=5 // pred_check
        %p1228 = pneg %p1227
      $region65: #{tpu_custom_call.1} parent=5 // pred_check_branch
        %1230 = sbr.rel (%p1228) target = $region67
      $region66: #{tpu_custom_call.1} parent=5 // pred_region
        %s1231 = ssub.s32 %s24, 2
        // Predicated region
        $region68: #{tpu_custom_call.1} parent=66 // pred_check
          %p1232 = pneg %p133
        $region69: #{tpu_custom_call.1} parent=66 // pred_check_branch
          %1234 = sbr.rel (%p1232) target = $region71
        $region70: #{tpu_custom_call.1} parent=66 // pred_region
          %s1235 = sand.u32 %s118, 1
          %s1236 = scalar_lea.sflag [#allocation7], %s1235
          %s1237 = sand.u32 %s118, 1
          %s1238 = smul.addr %s1237, 8
          %s1239 = scalar_lea.vmem [#allocation6], %s1238
          %1240 = dma.done %s1236, 128
        $region71: #{tpu_custom_call.1} parent=66 // pred_fallthru
          _
      $region67: #{tpu_custom_call.1} parent=5 // pred_fallthru
        _
    $region6: #{tpu_custom_call.1} parent=1 // loop_footer
      %s28 = sadd.s32 1, %s24
    $region7: #{tpu_custom_call.1} parent=1 // loop_footer_branch
      %23 = sbr.rel target = $region3
    $region8: #{tpu_custom_call.1} parent=1 // loop_exit
      _
    %1241 = vsyncpa [#allocation7], 1
    %s1242 = scalar_lea.sflag [#allocation7], 1
    %1243 = vsyncpa %s1242, 1

</llo_original>
